<compile_context>
chip_gen: v5e
topology: v5e:2x2
jax: 0.10.0
libtpu: 0.0.40
codegen_flags: <defaults>
</compile_context>

<pallas_src>
from typing import NamedTuple

import jax
import jax.numpy as jnp
from jax.experimental import pallas as pl
from jax.experimental.pallas import tpu as pltpu

K_QUEUE = 7500     # queue length (fixed in the module __init__)
T = 0.5            # temperature
TOP_K = 25
TK = 512           # lane block over the queue axis (KP = 7680 = 15 * 512)
PAD_LABEL = -1     # sentinel label for pad columns (real labels are >= 0)


class SamplerState(NamedTuple):
    fqt_bf16: jax.Array          # [H, KP] transposed, padded, bf16 queue
    label_queue_pad: jax.Array   # [KP]    int32, PAD_LABEL on pad columns
    k_real: int


def _round_up(x, m):
    return ((x + m - 1) // m) * m


def init_pos_neg_sampler(key, num_classes, hidden_size):
    """Mimics PosNegSampler.__init__ and caches the kernel-friendly queue."""
    k1, k2 = jax.random.split(key)
    label_queue = jax.random.randint(k1, (K_QUEUE,), 0, num_classes + 1,
                                     dtype=jnp.int32)
    feature_queue = jax.random.normal(k2, (K_QUEUE, hidden_size), jnp.float32)
    feature_queue = feature_queue / jnp.maximum(
        jnp.linalg.norm(feature_queue, axis=0, keepdims=True), 1e-12)

    kp = _round_up(K_QUEUE, TK)
    fqt = jnp.zeros((hidden_size, kp), jnp.bfloat16)
    fqt = fqt.at[:, :K_QUEUE].set(feature_queue.T.astype(jnp.bfloat16))
    lab = jnp.full((kp,), PAD_LABEL, jnp.int32).at[:K_QUEUE].set(label_queue)
    return SamplerState(fqt, lab, K_QUEUE), feature_queue, label_queue


def _sampler_kernel(q_ref, fqt_ref, labq_ref, labqueue_ref,
                    cos_ref, poscnt_ref):
    # MXU: [B, H] bf16 @ [H, TK] bf16 -> [B, TK] f32
    cos = jnp.dot(q_ref[...], fqt_ref[...], preferred_element_type=jnp.float32)
    labqueue = labqueue_ref[...]                       # [1, TK] int32
    valid = labqueue >= 0                              # pad columns carry -1
    cos_ref[...] = jnp.where(valid, cos, jnp.float32(-jnp.inf))
    # positives: queue label == query label (pads never match)
    pos_mask = labqueue == labq_ref[...]               # [1,TK]==[B,1] -> [B,TK]
    poscnt_ref[0] = jnp.sum(pos_mask.astype(jnp.int32), axis=-1, keepdims=True)
    # neg counts are computed arithmetically in glue (K_real - pos_cnt).


def pos_neg_sampler_core(liner_q, label_q, state: SamplerState):
    """Pallas hot path: bf16 cosine-sim matmul + pad masking + pos counts."""
    B, H = liner_q.shape
    KP = state.fqt_bf16.shape[1]
    n_blocks = KP // TK

    q = liner_q.astype(jnp.bfloat16)
    labq = label_q.astype(jnp.int32).reshape(B, 1)
    labqueue = state.label_queue_pad.reshape(1, KP)

    cos, pos_part = pl.pallas_call(
        _sampler_kernel,
        out_shape=(
            jax.ShapeDtypeStruct((B, KP), jnp.float32),        # cos_sim (pads=-inf)
            jax.ShapeDtypeStruct((n_blocks, B, 1), jnp.int32), # per-block pos counts
        ),
        grid_spec=pltpu.PrefetchScalarGridSpec(
            num_scalar_prefetch=0,
            grid=(n_blocks,),
            in_specs=[
                pl.BlockSpec((B, H), lambda k: (0, 0)),    # liner_q (resident)
                pl.BlockSpec((H, TK), lambda k: (0, k)),   # queue^T block
                pl.BlockSpec((B, 1), lambda k: (0, 0)),    # query labels
                pl.BlockSpec((1, TK), lambda k: (0, k)),   # queue labels block
            ],
            out_specs=(
                pl.BlockSpec((B, TK), lambda k: (0, k)),
                pl.BlockSpec((1, B, 1), lambda k: (k, 0, 0)),
            ),
        ),
        compiler_params=pltpu.CompilerParams(
            dimension_semantics=("parallel",)),
    )(q, state.fqt_bf16, labq, labqueue)

    pos_cnt = jnp.sum(pos_part[:, :, 0], axis=0)               # [B] int32
    return cos, pos_cnt


def pos_neg_sampler_forward(liner_q, label_q, state: SamplerState):
    """Reproduces PosNegSampler.forward semantics (bf16 matmul inputs)."""
    cos_sim, pos_cnt = pos_neg_sampler_core(liner_q, label_q, state)
    neg_cnt = state.k_real - pos_cnt                           # arithmetic, exact

    # TODO(synk): data-dependent output width (neg_min) and the None early
    # return force a host sync + eager tail, matching the reference module.
    mins = jax.device_get(jnp.stack([jnp.min(pos_cnt), jnp.min(neg_cnt)]))
    pos_min, neg_min = int(mins[0]), int(mins[1])
    if pos_min == 0 or neg_min == 0:
        return None
    neg_topk = min(pos_min, TOP_K)

    # positives: static-k top_k (k=25) then slice — identical values to the
    # reference's dynamic-k topk(pos_min)[:, :25], no per-(pos_min) recompile.
    pos_top = jax.lax.top_k(cos_sim, TOP_K)[0][:, :neg_topk]   # [B, neg_topk]
    pos_sample = pos_top.reshape(-1, 1)                        # [B*neg_topk, 1]

    # negatives: mask positives (mask re-derived from labels; pads already
    # -inf from the kernel), one static full descending sort, dynamic slice.
    pos_mask = state.label_queue_pad[None, :] == label_q.astype(jnp.int32)[:, None]
    neg_masked = jnp.where(pos_mask, jnp.float32(-jnp.inf), cos_sim)
    neg_desc = jnp.sort(neg_masked, axis=-1)[:, ::-1]
    neg_sorted = neg_desc[:, :neg_min]                         # [B, neg_min]
    neg_rep = jnp.repeat(neg_sorted, neg_topk, axis=0)         # [B*neg_topk, neg_min]

    logits_con = jnp.concatenate([pos_sample, neg_rep], axis=-1) / T
    return logits_con


if __name__ == "__main__":
    num_classes = 4
    hidden_size = 32
    batch = 2

    key = jax.random.PRNGKey(0)
    k_init, k_q, k_lab = jax.random.split(key, 3)

    state, feature_queue_f32, label_queue = init_pos_neg_sampler(
        k_init, num_classes, hidden_size)

    liner_q = jax.random.normal(k_q, (batch, hidden_size), jnp.float32)
    label_q = jax.random.randint(k_lab, (batch,), 0, num_classes + 1,
                                 dtype=jnp.int32)

    # Kernel sanity check vs plain-JAX f32 reference (bf16 input tolerance).
    cos, pos_cnt = pos_neg_sampler_core(liner_q, label_q, state)
    cos = jax.block_until_ready(cos)
    cos_ref = liner_q @ feature_queue_f32.T                    # [B, K]
    assert jnp.allclose(cos[:, :K_QUEUE], cos_ref, atol=2e-2), "cos mismatch"
    assert bool(jnp.all(cos[:, K_QUEUE:] == -jnp.inf)), "pad columns not -inf"
    pos_cnt_ref = jnp.sum(label_queue[None, :] == label_q[:, None], axis=-1)
    assert bool(jnp.all(pos_cnt == pos_cnt_ref)), "pos count mismatch"

    out = pos_neg_sampler_forward(liner_q, label_q, state)
    assert out is not None, "degenerate case (pos_min==0 or neg_min==0)"
    out = jax.block_until_ready(out)

    # expected shape: [batch * min(pos_min, 25), 1 + neg_min]
    assert out.ndim == 2 and out.shape[1] >= 2
    assert bool(jnp.all(jnp.isfinite(out)))
    print("KERNEL_OK")
</pallas_src>

<mosaic_0001>
module attributes {stable_mosaic.version = 11 : i64} {
  func.func @_sampler_kernel(%arg0: i32, %arg1: memref<2x32xbf16, #tpu.memory_space<vmem>>, %arg2: memref<32x512xbf16, #tpu.memory_space<vmem>>, %arg3: memref<2x1xi32, #tpu.memory_space<vmem>>, %arg4: memref<1x512xi32, #tpu.memory_space<vmem>>, %arg5: memref<2x512xf32, #tpu.memory_space<vmem>>, %arg6: memref<1x2x1xi32, #tpu.memory_space<vmem>>) attributes {dimension_semantics = [#tpu.dimension_semantics<parallel>], iteration_bounds = array<i64: 15>, scalar_prefetch = 0 : i64, scratch_operands = 0 : i64, tpu.core_type = #tpu.core_type<tc>, window_params = [{pipeline_mode = #tpu.pipeline_mode<synchronous>, transform_indices = @transform_0, window_bounds = array<i64: 2, 32>}, {transform_indices = @transform_1, window_bounds = array<i64: 32, 512>}, {pipeline_mode = #tpu.pipeline_mode<synchronous>, transform_indices = @transform_2, window_bounds = array<i64: 2, 1>}, {transform_indices = @transform_3, window_bounds = array<i64: 1, 512>}, {transform_indices = @transform_4, window_bounds = array<i64: 2, 512>}, {transform_indices = @transform_5, window_bounds = array<i64: 1, 2, 1>}]} {
    %c0 = arith.constant 0 : index
    %c0_0 = arith.constant 0 : index
    %0 = vector.load %arg1[%c0, %c0_0] : memref<2x32xbf16, #tpu.memory_space<vmem>>, vector<2x32xbf16>
    %c0_1 = arith.constant 0 : index
    %c0_2 = arith.constant 0 : index
    %1 = vector.load %arg2[%c0_1, %c0_2] : memref<32x512xbf16, #tpu.memory_space<vmem>>, vector<32x512xbf16>
    %cst = arith.constant dense<0.000000e+00> : vector<2x512xf32>
    %2 = tpu.matmul %0, %1, %cst {dimension_numbers = #tpu.dot_dimension_numbers<[1], [0], [0], [1], [0, 0, 1, 1], [], []>} : vector<2x32xbf16>, vector<32x512xbf16>, vector<2x512xf32> -> vector<2x512xf32>
    %c0_3 = arith.constant 0 : index
    %c0_4 = arith.constant 0 : index
    %3 = vector.load %arg4[%c0_3, %c0_4] : memref<1x512xi32, #tpu.memory_space<vmem>>, vector<1x512xi32>
    %c0_i32 = arith.constant 0 : i32
    %4 = vector.broadcast %c0_i32 : i32 to vector<1x512xi32>
    %5 = arith.cmpi sge, %3, %4 : vector<1x512xi32>
    %cst_5 = arith.constant 0xFF800000 : f32
    %6 = vector.shape_cast %5 : vector<1x512xi1> to vector<1x512xi1>
    %7 = vector.broadcast %6 : vector<1x512xi1> to vector<2x512xi1>
    %8 = vector.broadcast %cst_5 : f32 to vector<2x512xf32>
    %9 = arith.select %7, %2, %8 : vector<2x512xi1>, vector<2x512xf32>
    %c0_6 = arith.constant 0 : index
    %c0_7 = arith.constant 0 : index
    %10 = vector.load %arg5[%c0_6, %c0_7] : memref<2x512xf32, #tpu.memory_space<vmem>>, vector<2x512xf32>
    tpu.vector_store %arg5[%c0_6, %c0_7], %9 {strides = array<i32>} : memref<2x512xf32, #tpu.memory_space<vmem>>, vector<2x512xf32>,
    %c0_8 = arith.constant 0 : index
    %c0_9 = arith.constant 0 : index
    %11 = vector.load %arg3[%c0_8, %c0_9] : memref<2x1xi32, #tpu.memory_space<vmem>>, vector<2x1xi32>
    %12 = vector.broadcast %3 : vector<1x512xi32> to vector<2x512xi32>
    %13 = vector.broadcast %11 : vector<2x1xi32> to vector<2x512xi32>
    %14 = arith.cmpi eq, %12, %13 : vector<2x512xi32>
    %15 = arith.extui %14 : vector<2x512xi1> to vector<2x512xi32>
    %cst_10 = arith.constant dense<0> : vector<2xi32>
    %16 = vector.multi_reduction <add>, %15, %cst_10 [1] : vector<2x512xi32> to vector<2xi32>
    %17 = vector.shape_cast %16 : vector<2xi32> to vector<2x1xi32>
    %c0_11 = arith.constant 0 : index
    %c0_12 = arith.constant 0 : index
    %c0_13 = arith.constant 0 : index
    %18 = vector.load %arg6[%c0_11, %c0_12, %c0_13] : memref<1x2x1xi32, #tpu.memory_space<vmem>>, vector<1x2x1xi32>
    %19 = vector.shape_cast %18 : vector<1x2x1xi32> to vector<2x1xi32>
    %20 = vector.shape_cast %17 : vector<2x1xi32> to vector<1x2x1xi32>
    tpu.vector_store %arg6[%c0_11, %c0_12, %c0_13], %20 {strides = array<i32>} : memref<1x2x1xi32, #tpu.memory_space<vmem>>, vector<1x2x1xi32>,
    return
  }
  func.func @transform_0(%arg0: i32) -> (i32, i32) {
    %c0_i32 = arith.constant 0 : i32
    %c0_i32_0 = arith.constant 0 : i32
    %c0_i32_1 = arith.constant 0 : i32
    return %c0_i32, %c0_i32_0 : i32, i32
  }
  func.func @transform_1(%arg0: i32) -> (i32, i32) {
    %c0_i32 = arith.constant 0 : i32
    %c0_i32_0 = arith.constant 0 : i32
    return %c0_i32, %arg0 : i32, i32
  }
  func.func @transform_2(%arg0: i32) -> (i32, i32) {
    %c0_i32 = arith.constant 0 : i32
    %c0_i32_0 = arith.constant 0 : i32
    %c0_i32_1 = arith.constant 0 : i32
    return %c0_i32, %c0_i32_0 : i32, i32
  }
  func.func @transform_3(%arg0: i32) -> (i32, i32) {
    %c0_i32 = arith.constant 0 : i32
    %c0_i32_0 = arith.constant 0 : i32
    return %c0_i32, %arg0 : i32, i32
  }
  func.func @transform_4(%arg0: i32) -> (i32, i32) {
    %c0_i32 = arith.constant 0 : i32
    %c0_i32_0 = arith.constant 0 : i32
    return %c0_i32, %arg0 : i32, i32
  }
  func.func @transform_5(%arg0: i32) -> (i32, i32, i32) {
    %c0_i32 = arith.constant 0 : i32
    %c0_i32_0 = arith.constant 0 : i32
    %c0_i32_1 = arith.constant 0 : i32
    return %arg0, %c0_i32, %c0_i32_0 : i32, i32, i32
  }
}

</mosaic_0001>

<llo_original>
// kernel: tpu_custom_call.1
$region0: #{tpu_custom_call.1}
  #allocation0 [shape = 'u32[]', space=smem, size = 0x4, offset = 0x4, fixed_abs, tag = 'smem constant byte address 0x4 - core index']
  #allocation1 [shape = 'u32[72,128]{1,0:T(1,128)}', space=vmem, size = 0x9000, scoped, tag = 'internal scratch']
  %s0 = inlined_call_operand.vmem [shape: bf16[2,32], index: 0, kind: input, shape index: {}]
  %s1 = inlined_call_operand.hbm [shape: bf16[32,7680], index: 1, kind: input, shape index: {}]
  %s2 = inlined_call_operand.vmem [shape: s32[2,1], index: 2, kind: input, shape index: {}]
  %s3 = inlined_call_operand.hbm [shape: s32[1,7680], index: 3, kind: input, shape index: {}]
  %s4 = inlined_call_operand.hbm [shape: f32[2,7680], index: 4, kind: output, shape index: {0}]
  %s5 = inlined_call_operand.vmem [shape: s32[15,2,1], index: 5, kind: output, shape index: {1}]
  %6 = xla_tuple %s4, %s5
  %s7 = sld [smem:[#allocation0]]
  $region65: #{tpu_custom_call.1} parent=0
    _
  %s9 = ssub.s32 1, %s7
  %s10 = scalar_select 0, %s9, %s7
  $region1: #{tpu_custom_call.1} parent=0
    #allocation2 [shape = 'u8[65536]{0}', space=vmem, size = 0x10000, scoped, tag = 'input window, operand 1']
    #allocation3 [shape = 's32[2]{0}', space=sflag, size = 0x8, scoped, tag = 'scoped memory for tpu_custom_call.1']
    #allocation4 [shape = 's32[2]{0}', space=sflag, size = 0x8, scoped, tag = 'scoped memory for tpu_custom_call.1']
    #allocation5 [shape = 'u8[4096]{0}', space=vmem, size = 0x1000, scoped, tag = 'input window, operand 3']
    #allocation6 [shape = 's32[2]{0}', space=sflag, size = 0x8, scoped, tag = 'scoped memory for tpu_custom_call.1']
    #allocation7 [shape = 'u8[8192]{0}', space=vmem, size = 0x2000, scoped, tag = 'output window, operand 0']
    %11 = vsyncpa [#allocation3], 0
    %s12 = scalar_lea.sflag [#allocation3], 1
    %13 = vsyncpa %s12, 0
    %14 = vsyncpa [#allocation6], 0
    %s15 = scalar_lea.sflag [#allocation6], 1
    %16 = vsyncpa %s15, 0
    %17 = vsyncpa [#allocation4], 0
    %s18 = scalar_lea.sflag [#allocation4], 1
    %19 = vsyncpa %s18, 0
    loop: start=0, step=1, limit=17
    $region2: #{tpu_custom_call.1} parent=1 // loop_pre_header
      _
    $region3: #{tpu_custom_call.1} parent=1 // loop_header
      %s21 = sphi 0, %s25
      %p22 = scmp.ge.s32.totalorder %s21, 17
      %s29 = sphi 0, %s29
      %s31 = sphi 0, %s29
      %s32 = sphi 0, %s31
      %s46 = sphi 0, %s32
      %s52 = sphi 0, %s54
      %s55 = sphi 0, %s52
      %s56 = sphi 0, %s55
      %s72 = sphi 0, %s56
      %s76 = sphi 0, %s76
      %s78 = sphi 0, %s76
      %s79 = sphi 0, %s78
      %s93 = sphi 0, %s79
      %s99 = sphi 0, %s101
      %s102 = sphi 0, %s99
      %s103 = sphi 0, %s102
      %s119 = sphi 0, %s103
      %s125 = sphi 0, %s127
      %s128 = sphi 0, %s125
      %s129 = sphi 0, %s128
      %s145 = sphi 0, %s129
      %s151 = sphi 0, %s153
      %s154 = sphi 0, %s151
      %s155 = sphi 0, %s154
      %s171 = sphi 0, %s155
    $region4: #{tpu_custom_call.1} parent=1 // loop_header_branch
      %24 = sbr.rel (%p22) target = $region8
    $region5: #{tpu_custom_call.1} parent=1 // loop_body
      %s26 = ssub.s32 %s21, 1
      %s27 = ssub.s32 %s21, 2
      %s28 = sadd.s32 %s21, 1
      %s30 = sadd.s32 %s29, 1
      %p33 = scmp.eq.s32.totalorder %s21, 14
      %p34 = scmp.ne.s32.totalorder %s29, %s31
      %p35 = scmp.eq.s32.totalorder %s21, 0
      %p36 = por %p34, %p35
      %p37 = scmp.ne.s32.totalorder %s29, %s31
      %p38 = scmp.eq.s32.totalorder %s26, 14
      %p39 = por %p37, %p38
      %p40 = scmp.ne.s32.totalorder %s31, %s32
      %p41 = scmp.eq.s32.totalorder %s26, 0
      %p42 = por %p40, %p41
      %p43 = scmp.ne.s32.totalorder %s31, %s32
      %p44 = scmp.eq.s32.totalorder %s27, 14
      %p45 = por %p43, %p44
      %p47 = scmp.ne.s32.totalorder %s32, %s46
      %p48 = scmp.eq.s32.totalorder %s27, 0
      %p49 = por %p47, %p48
      %s50 = ssub.s32 %s21, %s28
      %p51 = scmp.eq.s32.totalorder %s50, 0
      %s53 = sadd.s32 %s52, 1
      %s54 = scalar_select %p51, %s52, %s53
      %p57 = pneg %p51
      %p58 = scmp.eq.s32.totalorder %s21, 14
      %p59 = por %p57, %p58
      %p60 = scmp.ne.s32.totalorder %s52, %s55
      %p61 = scmp.eq.s32.totalorder %s21, 0
      %p62 = por %p60, %p61
      %p63 = scmp.ne.s32.totalorder %s52, %s55
      %p64 = scmp.eq.s32.totalorder %s26, 14
      %p65 = por %p63, %p64
      %p66 = scmp.ne.s32.totalorder %s55, %s56
      %p67 = scmp.eq.s32.totalorder %s26, 0
      %p68 = por %p66, %p67
      %p69 = scmp.ne.s32.totalorder %s55, %s56
      %p70 = scmp.eq.s32.totalorder %s27, 14
      %p71 = por %p69, %p70
      %p73 = scmp.ne.s32.totalorder %s56, %s72
      %p74 = scmp.eq.s32.totalorder %s27, 0
      %p75 = por %p73, %p74
      %s77 = sadd.s32 %s76, 1
      %p80 = scmp.eq.s32.totalorder %s21, 14
      %p81 = scmp.ne.s32.totalorder %s76, %s78
      %p82 = scmp.eq.s32.totalorder %s21, 0
      %p83 = por %p81, %p82
      %p84 = scmp.ne.s32.totalorder %s76, %s78
      %p85 = scmp.eq.s32.totalorder %s26, 14
      %p86 = por %p84, %p85
      %p87 = scmp.ne.s32.totalorder %s78, %s79
      %p88 = scmp.eq.s32.totalorder %s26, 0
      %p89 = por %p87, %p88
      %p90 = scmp.ne.s32.totalorder %s78, %s79
      %p91 = scmp.eq.s32.totalorder %s27, 14
      %p92 = por %p90, %p91
      %p94 = scmp.ne.s32.totalorder %s79, %s93
      %p95 = scmp.eq.s32.totalorder %s27, 0
      %p96 = por %p94, %p95
      %s97 = ssub.s32 %s21, %s28
      %p98 = scmp.eq.s32.totalorder %s97, 0
      %s100 = sadd.s32 %s99, 1
      %s101 = scalar_select %p98, %s99, %s100
      %p104 = pneg %p98
      %p105 = scmp.eq.s32.totalorder %s21, 14
      %p106 = por %p104, %p105
      %p107 = scmp.ne.s32.totalorder %s99, %s102
      %p108 = scmp.eq.s32.totalorder %s21, 0
      %p109 = por %p107, %p108
      %p110 = scmp.ne.s32.totalorder %s99, %s102
      %p111 = scmp.eq.s32.totalorder %s26, 14
      %p112 = por %p110, %p111
      %p113 = scmp.ne.s32.totalorder %s102, %s103
      %p114 = scmp.eq.s32.totalorder %s26, 0
      %p115 = por %p113, %p114
      %p116 = scmp.ne.s32.totalorder %s102, %s103
      %p117 = scmp.eq.s32.totalorder %s27, 14
      %p118 = por %p116, %p117
      %p120 = scmp.ne.s32.totalorder %s103, %s119
      %p121 = scmp.eq.s32.totalorder %s27, 0
      %p122 = por %p120, %p121
      %s123 = ssub.s32 %s21, %s28
      %p124 = scmp.eq.s32.totalorder %s123, 0
      %s126 = sadd.s32 %s125, 1
      %s127 = scalar_select %p124, %s125, %s126
      %p130 = pneg %p124
      %p131 = scmp.eq.s32.totalorder %s21, 14
      %p132 = por %p130, %p131
      %p133 = scmp.ne.s32.totalorder %s125, %s128
      %p134 = scmp.eq.s32.totalorder %s21, 0
      %p135 = por %p133, %p134
      %p136 = scmp.ne.s32.totalorder %s125, %s128
      %p137 = scmp.eq.s32.totalorder %s26, 14
      %p138 = por %p136, %p137
      %p139 = scmp.ne.s32.totalorder %s128, %s129
      %p140 = scmp.eq.s32.totalorder %s26, 0
      %p141 = por %p139, %p140
      %p142 = scmp.ne.s32.totalorder %s128, %s129
      %p143 = scmp.eq.s32.totalorder %s27, 14
      %p144 = por %p142, %p143
      %p146 = scmp.ne.s32.totalorder %s129, %s145
      %p147 = scmp.eq.s32.totalorder %s27, 0
      %p148 = por %p146, %p147
      %s149 = ssub.s32 %s21, %s28
      %p150 = scmp.eq.s32.totalorder %s149, 0
      %s152 = sadd.s32 %s151, 1
      %s153 = scalar_select %p150, %s151, %s152
      %p156 = pneg %p150
      %p157 = scmp.eq.s32.totalorder %s21, 14
      %p158 = por %p156, %p157
      %p159 = scmp.ne.s32.totalorder %s151, %s154
      %p160 = scmp.eq.s32.totalorder %s21, 0
      %p161 = por %p159, %p160
      %p162 = scmp.ne.s32.totalorder %s151, %s154
      %p163 = scmp.eq.s32.totalorder %s26, 14
      %p164 = por %p162, %p163
      %p165 = scmp.ne.s32.totalorder %s154, %s155
      %p166 = scmp.eq.s32.totalorder %s26, 0
      %p167 = por %p165, %p166
      %p168 = scmp.ne.s32.totalorder %s154, %s155
      %p169 = scmp.eq.s32.totalorder %s27, 14
      %p170 = por %p168, %p169
      %p172 = scmp.ne.s32.totalorder %s155, %s171
      %p173 = scmp.eq.s32.totalorder %s27, 0
      %p174 = por %p172, %p173
      %p175 = scmp.le.s32.totalorder 1, %s21
      %p176 = scmp.lt.s32.totalorder %s21, 16
      %p177 = pnand %p175, %p176
      %p178 = pneg %p177
      // Predicated region
      $region9: #{tpu_custom_call.1} parent=5 // pred_check
        _
      $region10: #{tpu_custom_call.1} parent=5 // pred_check_branch
        %180 = sbr.rel (%p177) target = $region12
      $region11: #{tpu_custom_call.1} parent=5 // pred_region
        %s181 = ssub.s32 %s21, 1
        // Predicated region
        $region13: #{tpu_custom_call.1} parent=11 // pred_check
          %p182 = pneg %p42
        $region14: #{tpu_custom_call.1} parent=11 // pred_check_branch
          %184 = sbr.rel (%p182) target = $region16
        $region15: #{tpu_custom_call.1} parent=11 // pred_region
          _
        $region16: #{tpu_custom_call.1} parent=11 // pred_fallthru
          _
        // Predicated region
        $region17: #{tpu_custom_call.1} parent=11 // pred_check
          %p185 = pneg %p89
        $region18: #{tpu_custom_call.1} parent=11 // pred_check_branch
          %187 = sbr.rel (%p185) target = $region20
        $region19: #{tpu_custom_call.1} parent=11 // pred_region
          _
        $region20: #{tpu_custom_call.1} parent=11 // pred_fallthru
          _
      $region12: #{tpu_custom_call.1} parent=5 // pred_fallthru
        _
      %p188 = scmp.lt.s32.totalorder %s21, 15
      // Predicated region
      $region21: #{tpu_custom_call.1} parent=5 // pred_check
        %p189 = pneg %p188
      $region22: #{tpu_custom_call.1} parent=5 // pred_check_branch
        %191 = sbr.rel (%p189) target = $region24
      $region23: #{tpu_custom_call.1} parent=5 // pred_region
        // Predicated region
        $region25: #{tpu_custom_call.1} parent=23 // pred_check
          %p192 = pneg %p62
        $region26: #{tpu_custom_call.1} parent=23 // pred_check_branch
          %194 = sbr.rel (%p192) target = $region28
        $region27: #{tpu_custom_call.1} parent=23 // pred_region
          %s195 = sand.u32 %s52, 1
          %s196 = scalar_lea.sflag [#allocation3], %s195
          %s197 = sand.u32 %s52, 1
          %s198 = smul.addr %s197, 64
          %s199 = scalar_lea.vmem [#allocation2], %s198
          %s200 = smul.u32 4, %s21
          %202 = vsyncadd %s196, 0
          %s203 = smul.addr %s200, 4
          %s204 = scalar_lea.hbm %s1, %s203
          %s205 = sshll.u32 %s204, 4
          %s206 = int_to_ptr.hbm [resolvable:$true] %s205
          %s207 = sshll.u32 %s199, 4
          %s208 = int_to_ptr.vmem [resolvable:$true] %s207
          %213 = dma.hbm_to_vmem [thread:$0]  %s206, 1024, %s208, %s196, 3840, 256, 16
        $region28: #{tpu_custom_call.1} parent=23 // pred_fallthru
          _
        // Predicated region
        $region29: #{tpu_custom_call.1} parent=23 // pred_check
          %p214 = pneg %p109
        $region30: #{tpu_custom_call.1} parent=23 // pred_check_branch
          %216 = sbr.rel (%p214) target = $region32
        $region31: #{tpu_custom_call.1} parent=23 // pred_region
          %s217 = sand.u32 %s99, 1
          %s218 = scalar_lea.sflag [#allocation6], %s217
          %s219 = sand.u32 %s99, 1
          %s220 = smul.addr %s219, 4
          %s221 = scalar_lea.vmem [#allocation5], %s220
          %s222 = smul.u32 4, %s21
          %224 = vsyncadd %s218, 0
          %s225 = scalar_lea.hbm %s3, %s222
          %s227 = sshll.u32 %s225, 4
          %s228 = int_to_ptr.hbm [resolvable:$true] %s227
          %s229 = sshll.u32 %s221, 4
          %s230 = int_to_ptr.vmem [resolvable:$true] %s229
          %232 = dma.hbm_to_vmem [thread:$0]  %s228, 64, %s230, %s218
        $region32: #{tpu_custom_call.1} parent=23 // pred_fallthru
          _
      $region24: #{tpu_custom_call.1} parent=5 // pred_fallthru
        _
      %p233 = scmp.le.s32.totalorder 1, %s21
      %p234 = scmp.lt.s32.totalorder %s21, 16
      %p235 = pnand %p233, %p234
      %p236 = pneg %p235
      // Predicated region
      $region33: #{tpu_custom_call.1} parent=5 // pred_check
        _
      $region34: #{tpu_custom_call.1} parent=5 // pred_check_branch
        %238 = sbr.rel (%p235) target = $region36
      $region35: #{tpu_custom_call.1} parent=5 // pred_region
        %s239 = ssub.s32 %s21, 1
        %s240 = sand.u32 %s55, 1
        %s241 = scalar_lea.sflag [#allocation3], %s240
        %s242 = sand.u32 %s55, 1
        %s243 = smul.addr %s242, 64
        %s244 = scalar_lea.vmem [#allocation2], %s243
        // Predicated region
        $region37: #{tpu_custom_call.1} parent=35 // pred_check
          %p245 = pneg %p68
        $region38: #{tpu_custom_call.1} parent=35 // pred_check_branch
          %247 = sbr.rel (%p245) target = $region40
        $region39: #{tpu_custom_call.1} parent=35 // pred_region
          %249 = dma.done %s241, 1024
        $region40: #{tpu_custom_call.1} parent=35 // pred_fallthru
          _
        %s250 = sand.u32 %s102, 1
        %s251 = scalar_lea.sflag [#allocation6], %s250
        %s252 = sand.u32 %s102, 1
        %s253 = smul.addr %s252, 4
        %s254 = scalar_lea.vmem [#allocation5], %s253
        // Predicated region
        $region41: #{tpu_custom_call.1} parent=35 // pred_check
          %p255 = pneg %p115
        $region42: #{tpu_custom_call.1} parent=35 // pred_check_branch
          %257 = sbr.rel (%p255) target = $region44
        $region43: #{tpu_custom_call.1} parent=35 // pred_region
          %259 = dma.done %s251, 64
        $region44: #{tpu_custom_call.1} parent=35 // pred_fallthru
          _
        %p260 = pneg %p42
        %p261 = pneg %p39
        %s262 = sand.u32 %s55, 1
        %s263 = scalar_lea.sflag [#allocation3], %s262
        %s264 = sand.u32 %s55, 1
        %s265 = smul.addr %s264, 64
        %s266 = scalar_lea.vmem [#allocation2], %s265
        %p267 = pneg %p68
        %p268 = pneg %p65
        %p269 = pneg %p89
        %p270 = pneg %p86
        %s271 = sand.u32 %s102, 1
        %s272 = scalar_lea.sflag [#allocation6], %s271
        %s273 = sand.u32 %s102, 1
        %s274 = smul.addr %s273, 4
        %s275 = scalar_lea.vmem [#allocation5], %s274
        %p276 = pneg %p115
        %p277 = pneg %p112
        %p278 = pneg %p141
        %p279 = pneg %p138
        %s280 = sand.u32 %s128, 1
        %s281 = scalar_lea.sflag [#allocation4], %s280
        %s282 = sand.u32 %s128, 1
        %s283 = smul.addr %s282, 8
        %s284 = scalar_lea.vmem [#allocation7], %s283
        %p285 = pneg %p167
        %p286 = pneg %p164
        %p287 = scmp.lt.s32.totalorder %s26, 14
        %s288 = scalar_select %p287, %s26, 14
        %s289 = smul.addr %s288, 2
        %s290 = scalar_lea.vmem %s5, %s289
        %s291 = smul.u32 4, %s26
        %s292 = smul.u32 4, %s26
        %s293 = smul.u32 4, %s26
        %p294 = scmp.lt.s32.totalorder %s26, 14
        %s295 = scalar_select %p294, %s26, 14
        %s296 = smul.addr %s295, 2
        %s297 = scalar_lea.vmem %s5, %s296
        %v299 = vld [vmem:[%s0] sm:$0x1]
        %v300 = vld [vmem:[%s244] sm:$0xff]
        %v301 = vld [vmem:[%s244 + $0x8] sm:$0xff]
        %v302 = vld [vmem:[%s244 + $0x10] sm:$0xff]
        %v303 = vld [vmem:[%s244 + $0x18] sm:$0xff]
        %v304 = vld [vmem:[%s244 + $0x20] sm:$0xff]
        %v305 = vld [vmem:[%s244 + $0x28] sm:$0xff]
        %v306 = vld [vmem:[%s244 + $0x30] sm:$0xff]
        %v307 = vld [vmem:[%s244 + $0x38] sm:$0xff]
        %v316 = vunpack.c.l.b16 %v300
        %v317 = vunpack.c.h.b16 %v300
        %v318 = vunpack.c.l.b16 %v301
        %v319 = vunpack.c.h.b16 %v301
        %v320 = vunpack.c.l.b16 %v302
        %v321 = vunpack.c.h.b16 %v302
        %v322 = vunpack.c.l.b16 %v303
        %v323 = vunpack.c.h.b16 %v303
        %v324 = vunpack.c.l.b16 %v304
        %v325 = vunpack.c.h.b16 %v304
        %v326 = vunpack.c.l.b16 %v305
        %v327 = vunpack.c.h.b16 %v305
        %v328 = vunpack.c.l.b16 %v306
        %v329 = vunpack.c.h.b16 %v306
        %v330 = vunpack.c.l.b16 %v307
        %v331 = vunpack.c.h.b16 %v307
        %v332 = vpack.c.b16 %v320, %v316
        %v333 = vpack.c.b16 %v321, %v317
        %v334 = vpack.c.b16 %v322, %v318
        %v335 = vpack.c.b16 %v323, %v319
        %v336 = vpack.c.b16 %v328, %v324
        %v337 = vpack.c.b16 %v329, %v325
        %v338 = vpack.c.b16 %v330, %v326
        %v339 = vpack.c.b16 %v331, %v327
        %vm348 = vcmask 261120
        %v350 = vsel %vm348, %v299, 0
        %352 = vmatpush.bf16.msra.mxu0 0
        %353 = vmatpush.bf16.msra.mxu0 0
        %354 = vmatpush.bf16.msra.mxu0 0
        %355 = vmatpush.bf16.msra.mxu0 0
        %356 = vmatpush.bf16.msra.mxu0 0
        %357 = vmatpush.bf16.msra.mxu0 0
        %358 = vmatpush.bf16.msra.mxu0 %v336
        %359 = vmatpush.bf16.msra.mxu0 %v332
        %360 = vmatmul.bf16.gmra.mxu0 %v350
        %v361 = vpop.f32.mrf.mxu0
        %v362 = vadd.f32 0.0, %v361
        %v363 = vpop.f32.mrf.mxu0
        %364 = vdwg.mxu0
        %365 = vmatpush.bf16.msra.mxu0 0
        %366 = vmatpush.bf16.msra.mxu0 0
        %367 = vmatpush.bf16.msra.mxu0 0
        %368 = vmatpush.bf16.msra.mxu0 0
        %369 = vmatpush.bf16.msra.mxu0 0
        %370 = vmatpush.bf16.msra.mxu0 0
        %371 = vmatpush.bf16.msra.mxu0 %v337
        %372 = vmatpush.bf16.msra.mxu0 %v333
        %373 = vmatmul.bf16.gmra.mxu0 %v350
        %v374 = vpop.f32.mrf.mxu0
        %v375 = vadd.f32 0.0, %v374
        %v376 = vpop.f32.mrf.mxu0
        %377 = vdwg.mxu0
        %378 = vmatpush.bf16.msra.mxu0 0
        %379 = vmatpush.bf16.msra.mxu0 0
        %380 = vmatpush.bf16.msra.mxu0 0
        %381 = vmatpush.bf16.msra.mxu0 0
        %382 = vmatpush.bf16.msra.mxu0 0
        %383 = vmatpush.bf16.msra.mxu0 0
        %384 = vmatpush.bf16.msra.mxu0 %v338
        %385 = vmatpush.bf16.msra.mxu0 %v334
        %386 = vmatmul.bf16.gmra.mxu0 %v350
        %v387 = vpop.f32.mrf.mxu0
        %v388 = vadd.f32 0.0, %v387
        %v389 = vpop.f32.mrf.mxu0
        %390 = vdwg.mxu0
        %391 = vmatpush.bf16.msra.mxu0 0
        %392 = vmatpush.bf16.msra.mxu0 0
        %393 = vmatpush.bf16.msra.mxu0 0
        %394 = vmatpush.bf16.msra.mxu0 0
        %395 = vmatpush.bf16.msra.mxu0 0
        %396 = vmatpush.bf16.msra.mxu0 0
        %397 = vmatpush.bf16.msra.mxu0 %v339
        %398 = vmatpush.bf16.msra.mxu0 %v335
        %399 = vmatmul.bf16.gmra.mxu0 %v350
        %v400 = vpop.f32.mrf.mxu0
        %v401 = vadd.f32 0.0, %v400
        %v402 = vpop.f32.mrf.mxu0
        %403 = vdwg.mxu0
        %v404 = vld [vmem:[%s254] sm:$0xf]
        %vm405 = vcmp.ge.s32.totalorder %v404, 0
        %v406 = vsel %vm405, 1, 0
        %v407 = vperm.slane %v406, 0
        %v408 = vperm.slane %v406, 1
        %v409 = vperm.slane %v406, 2
        %v410 = vperm.slane %v406, 3
        %vm411 = vcmp.eq.s32.totalorder %v407, 1
        %vm412 = vcmp.eq.s32.totalorder %v408, 1
        %vm413 = vcmp.eq.s32.totalorder %v409, 1
        %vm414 = vcmp.eq.s32.totalorder %v410, 1
        %v415 = vsel %vm411, %v362, -inf
        %v416 = vsel %vm412, %v375, -inf
        %v417 = vsel %vm413, %v388, -inf
        %v418 = vsel %vm414, %v401, -inf
        %v423 = vrot.slane %v416, 6
        %v424 = vrot.slane %v417, 4
        %v425 = vrot.slane %v418, 2
        %vm426 = vcmask 1041408
        %v427 = vsel %vm426, %v415, %v423
        %vm428 = vcmask 1045508
        %v429 = vsel %vm428, %v424, %v425
        %vm430 = vcmask 1043456
        %v431 = vsel %vm430, %v427, %v429
        %433 = vst [vmem:[%s284] sm:$0xff] %v431
        %v434 = vld [vmem:[%s2] sm:$0x3]
        %v435 = vperm.slane %v404, 0
        %v436 = vperm.slane %v404, 1
        %v437 = vperm.slane %v404, 2
        %v438 = vperm.slane %v404, 3
        %439 = vset.pattern.permute.xlu0 0
        %440 = vperm.xlu0 %439, %v434
        %v441 = vpop.permute.xlu0 %440
        %vm442 = vcmp.eq.s32.totalorder %v435, %v441
        %vm443 = vcmp.eq.s32.totalorder %v436, %v441
        %vm444 = vcmp.eq.s32.totalorder %v437, %v441
        %vm445 = vcmp.eq.s32.totalorder %v438, %v441
        %v446 = vsel %vm442, 1, 0
        %v447 = vsel %vm443, 1, 0
        %v448 = vsel %vm444, 1, 0
        %v449 = vsel %vm445, 1, 0
        %v450 = vsel %vm426, %v446, 0
        %v451 = vsel %vm426, %v447, 0
        %v452 = vsel %vm426, %v448, 0
        %v453 = vsel %vm426, %v449, 0
        %v454 = vadd.s32 %v450, %v451
        %v455 = vadd.s32 %v452, %v453
        %v456 = vadd.s32 %v454, %v455
        %v457 = vand.u32 %v456, 65535
        %v458 = vshrl.u32 %v456, 16
        %v459 = vcvt.s32.f32 %v457
        %v460 = vcvt.s32.f32 %v458
        %461 = vadd.xlane.f32.xlu0 %v459
        %v462 = vpop.xlane.xlu0 %461
        %463 = vadd.xlane.f32.xlu0 %v460
        %v464 = vpop.xlane.xlu0 %463
        %v465 = vcvt.f32.s32 %v462
        %v466 = vcvt.f32.s32 %v464
        %v467 = vshll.u32 %v466, 16
        %v468 = vadd.s32 %v467, %v465
        %vm469 = vcmask 1024
        %470 = vst.msk [vmem:[%s297] sm:$0x3] %vm469, %v468
        %s471 = sand.u32 %s128, 1
        %s472 = scalar_lea.sflag [#allocation4], %s471
        %s473 = sand.u32 %s128, 1
        %s474 = smul.addr %s473, 8
        %s475 = scalar_lea.vmem [#allocation7], %s474
        %p476 = scmp.lt.s32.totalorder %s26, 14
        %s477 = scalar_select %p476, %s26, 14
        %s478 = smul.addr %s477, 2
        %s479 = scalar_lea.vmem %s5, %s478
        // Predicated region
        $region45: #{tpu_custom_call.1} parent=35 // pred_check
          %p480 = pneg %p138
        $region46: #{tpu_custom_call.1} parent=35 // pred_check_branch
          %482 = sbr.rel (%p480) target = $region48
        $region47: #{tpu_custom_call.1} parent=35 // pred_region
          %s483 = smul.u32 4, %s26
          %485 = vsyncadd %s472, 0
          %s486 = smul.addr %s483, 2
          %s487 = scalar_lea.hbm %s4, %s486
          %s489 = sshll.u32 %s475, 4
          %s490 = int_to_ptr.vmem [resolvable:$true] %s489
          %s491 = sshll.u32 %s487, 4
          %s492 = int_to_ptr.hbm [resolvable:$true] %s491
          %494 = dma.vmem_to_hbm [thread:$0]  %s490, 128, %s492, %s472
        $region48: #{tpu_custom_call.1} parent=35 // pred_fallthru
          _
        // Predicated region
        $region49: #{tpu_custom_call.1} parent=35 // pred_check
          %p495 = pneg %p164
        $region50: #{tpu_custom_call.1} parent=35 // pred_check_branch
          %497 = sbr.rel (%p495) target = $region52
        $region51: #{tpu_custom_call.1} parent=35 // pred_region
          _
        $region52: #{tpu_custom_call.1} parent=35 // pred_fallthru
          _
      $region36: #{tpu_custom_call.1} parent=5 // pred_fallthru
        _
      %p498 = scmp.le.s32.totalorder 2, %s21
      // Predicated region
      $region53: #{tpu_custom_call.1} parent=5 // pred_check
        %p499 = pneg %p498
      $region54: #{tpu_custom_call.1} parent=5 // pred_check_branch
        %501 = sbr.rel (%p499) target = $region56
      $region55: #{tpu_custom_call.1} parent=5 // pred_region
        %s502 = ssub.s32 %s21, 2
        // Predicated region
        $region57: #{tpu_custom_call.1} parent=55 // pred_check
          %p503 = pneg %p144
        $region58: #{tpu_custom_call.1} parent=55 // pred_check_branch
          %505 = sbr.rel (%p503) target = $region60
        $region59: #{tpu_custom_call.1} parent=55 // pred_region
          %s506 = sand.u32 %s129, 1
          %s507 = scalar_lea.sflag [#allocation4], %s506
          %s508 = sand.u32 %s129, 1
          %s509 = smul.addr %s508, 8
          %s510 = scalar_lea.vmem [#allocation7], %s509
          %512 = dma.done %s507, 128
        $region60: #{tpu_custom_call.1} parent=55 // pred_fallthru
          _
        // Predicated region
        $region61: #{tpu_custom_call.1} parent=55 // pred_check
          %p513 = pneg %p170
        $region62: #{tpu_custom_call.1} parent=55 // pred_check_branch
          %515 = sbr.rel (%p513) target = $region64
        $region63: #{tpu_custom_call.1} parent=55 // pred_region
          %p516 = scmp.lt.s32.totalorder %s27, 14
          %s517 = scalar_select %p516, %s27, 14
          %s518 = smul.addr %s517, 2
          %s519 = scalar_lea.vmem %s5, %s518
        $region64: #{tpu_custom_call.1} parent=55 // pred_fallthru
          _
      $region56: #{tpu_custom_call.1} parent=5 // pred_fallthru
        _
    $region6: #{tpu_custom_call.1} parent=1 // loop_footer
      %s25 = sadd.s32 1, %s21
    $region7: #{tpu_custom_call.1} parent=1 // loop_footer_branch
      %20 = sbr.rel target = $region3
    $region8: #{tpu_custom_call.1} parent=1 // loop_exit
      _
    %520 = vsyncpa [#allocation3], 1
    %s521 = scalar_lea.sflag [#allocation3], 1
    %522 = vsyncpa %s521, 1
    %523 = vsyncpa [#allocation6], 1
    %s524 = scalar_lea.sflag [#allocation6], 1
    %525 = vsyncpa %s524, 1
    %526 = vsyncpa [#allocation4], 1
    %s527 = scalar_lea.sflag [#allocation4], 1
    %528 = vsyncpa %s527, 1

</llo_original>
